<compile_context>
chip_gen: v7x
topology: tpu7x:2x2x1
jax: 0.10.0
libtpu: 0.0.40
codegen_flags: <defaults>
</compile_context>

<pallas_src>
import functools
import math

import jax
import jax.numpy as jnp
from jax.experimental import pallas as pl
from jax.experimental.pallas import tpu as pltpu


def _round_up(x, m):
    return ((x + m - 1) // m) * m


def _dist2logit_kernel(d_ref, w1_ref, b1_ref, w2_ref, b2_ref, w3_ref, b3_ref,
                       out_ref, *, eps, slope, use_sigmoid):
    # d_ref: (2, T) with pixels on lanes; row 0 = d0, row 1 = d1.
    d0 = d_ref[0:1, :]                       # (1, T)
    d1 = d_ref[1:2, :]                       # (1, T)

    # Per-pixel features (the torch.cat is never materialized).
    f2 = d0 - d1
    f3 = d0 / (d1 + eps)
    f4 = d1 / (d0 + eps)

    # Layer 1: 1x1 conv (5 -> C) as 5 broadcast FMAs on the VPU.
    w1 = w1_ref[...]                         # (C, 5)
    h = (w1[:, 0:1] * d0 + w1[:, 1:2] * d1 + w1[:, 2:3] * f2
         + w1[:, 3:4] * f3 + w1[:, 4:5] * f4 + b1_ref[...])      # (C, T)
    h = jnp.maximum(h, slope * h)            # LeakyReLU(0.2)

    # Layer 2: 1x1 conv (C -> C) on the MXU.
    h = jnp.dot(w2_ref[...], h, preferred_element_type=jnp.float32) + b2_ref[...]
    h = jnp.maximum(h, slope * h)

    # Layer 3: 1x1 conv (C -> 1) on the MXU, lane-dense (1, T) result.
    o = jnp.dot(w3_ref[...], h, preferred_element_type=jnp.float32) + b3_ref[...]
    if use_sigmoid:
        o = 1.0 / (1.0 + jnp.exp(-o))        # sigmoid (EUP exp)
    out_ref[...] = o.astype(out_ref.dtype)


def dist2logit_forward(d0, d1, params, *, eps=0.1, use_sigmoid=True,
                       tile_n=4096):
    """Pallas forward of Dist2LogitLayer.  d0, d1: (B, 1, H, W) float arrays."""
    assert d0.shape == d1.shape
    B, C_in, H, W = d0.shape
    assert C_in == 1, "Dist2LogitLayer takes single-channel distance maps"
    w1, b1, w2, b2, w3, b3 = params

    N = B * H * W
    # (2, N): pixels on the lane axis, the two distances on sublanes.
    d_in = jnp.stack([d0.reshape(-1), d1.reshape(-1)], axis=0).astype(jnp.float32)

    # Large lane-dense tiles; pad ragged N (zero pads are safe: eps > 0).
    tile = min(_round_up(tile_n, 128), _round_up(N, 128))
    n_pad = _round_up(N, tile)
    if n_pad != N:
        d_in = jnp.pad(d_in, ((0, 0), (0, n_pad - N)))
    grid = (n_pad // tile,)

    kernel = functools.partial(_dist2logit_kernel, eps=float(eps),
                               slope=0.2, use_sigmoid=use_sigmoid)

    def param_spec(shape):
        return pl.BlockSpec(shape, lambda i: (0, 0))

    out = pl.pallas_call(
        kernel,
        out_shape=jax.ShapeDtypeStruct((1, n_pad), jnp.float32),
        grid=grid,
        in_specs=[
            pl.BlockSpec((2, tile), lambda i: (0, i)),   # d0/d1 tile
            param_spec(w1.shape), param_spec(b1.shape),  # conv1
            param_spec(w2.shape), param_spec(b2.shape),  # conv2
            param_spec(w3.shape), param_spec(b3.shape),  # conv3
        ],
        out_specs=pl.BlockSpec((1, tile), lambda i: (0, i)),
        compiler_params=pltpu.CompilerParams(
            dimension_semantics=("parallel",)),
    )(d_in, w1, b1, w2, b2, w3, b3)

    return out[0, :N].reshape(B, 1, H, W)


def init_params(key, chn_mid=32):
    """Random (non-zero-bias) parameters.  Conv2d 1x1 weights are stored as
    (out_ch, in_ch); biases as (out_ch, 1) columns for lane broadcasting."""
    ks = jax.random.split(key, 6)
    w1 = jax.random.normal(ks[0], (chn_mid, 5), jnp.float32) * 0.5
    b1 = jax.random.normal(ks[1], (chn_mid, 1), jnp.float32) * 0.1
    w2 = jax.random.normal(ks[2], (chn_mid, chn_mid), jnp.float32) / math.sqrt(chn_mid)
    b2 = jax.random.normal(ks[3], (chn_mid, 1), jnp.float32) * 0.1
    w3 = jax.random.normal(ks[4], (1, chn_mid), jnp.float32) / math.sqrt(chn_mid)
    b3 = jax.random.normal(ks[5], (1, 1), jnp.float32) * 0.1
    return (w1, b1, w2, b2, w3, b3)


def reference_forward(d0, d1, params, *, eps=0.1, use_sigmoid=True):
    """Pure-JAX mirror of Dist2LogitLayer.forward (explicit concat + 1x1 convs)."""
    w1, b1, w2, b2, w3, b3 = params
    hp = jax.lax.Precision.HIGHEST
    x = jnp.concatenate(
        [d0, d1, d0 - d1, d0 / (d1 + eps), d1 / (d0 + eps)], axis=1)  # (B,5,H,W)
    h = jnp.einsum('oc,bchw->bohw', w1, x, precision=hp) + b1.reshape(1, -1, 1, 1)
    h = jnp.where(h > 0, h, 0.2 * h)
    h = jnp.einsum('oc,bchw->bohw', w2, h, precision=hp) + b2.reshape(1, -1, 1, 1)
    h = jnp.where(h > 0, h, 0.2 * h)
    o = jnp.einsum('oc,bchw->bohw', w3, h, precision=hp) + b3.reshape(1, -1, 1, 1)
    if use_sigmoid:
        o = jax.nn.sigmoid(o)
    return o


if __name__ == "__main__":
    key = jax.random.PRNGKey(0)
    kp, k0, k1, k2, k3 = jax.random.split(key, 5)

    chn_mid = 32
    params = init_params(kp, chn_mid)

    # Main test: B=2, 16x16 distance maps (distances are non-negative).
    B, H, W = 2, 16, 16
    d0 = jnp.abs(jax.random.normal(k0, (B, 1, H, W), jnp.float32))
    d1 = jnp.abs(jax.random.normal(k1, (B, 1, H, W), jnp.float32))

    out = jax.block_until_ready(dist2logit_forward(d0, d1, params))
    ref = jax.block_until_ready(reference_forward(d0, d1, params))
    assert out.shape == (B, 1, H, W), out.shape
    diff = float(jnp.max(jnp.abs(out - ref)))
    assert diff < 1e-3, f"mismatch vs reference: max abs diff {diff}"

    # Ragged-N test (exercises the padding path; 7*9=63 pixels).
    d0b = jnp.abs(jax.random.normal(k2, (1, 1, 7, 9), jnp.float32))
    d1b = jnp.abs(jax.random.normal(k3, (1, 1, 7, 9), jnp.float32))
    out_b = jax.block_until_ready(dist2logit_forward(d0b, d1b, params))
    ref_b = jax.block_until_ready(reference_forward(d0b, d1b, params))
    diff_b = float(jnp.max(jnp.abs(out_b - ref_b)))
    assert out_b.shape == (1, 1, 7, 9), out_b.shape
    assert diff_b < 1e-3, f"ragged mismatch vs reference: max abs diff {diff_b}"

    print("KERNEL_OK")
</pallas_src>

<mosaic_0001>
module attributes {stable_mosaic.version = 11 : i64} {
  func.func @_dist2logit_kernel(%arg0: i32, %arg1: memref<2x512xf32, #tpu.memory_space<vmem>>, %arg2: memref<32x5xf32, #tpu.memory_space<vmem>>, %arg3: memref<32x1xf32, #tpu.memory_space<vmem>>, %arg4: memref<32x32xf32, #tpu.memory_space<vmem>>, %arg5: memref<32x1xf32, #tpu.memory_space<vmem>>, %arg6: memref<1x32xf32, #tpu.memory_space<vmem>>, %arg7: memref<1x1xf32, #tpu.memory_space<vmem>>, %arg8: memref<1x512xf32, #tpu.memory_space<vmem>>) attributes {dimension_semantics = [#tpu.dimension_semantics<parallel>], iteration_bounds = array<i64: 1>, scalar_prefetch = 0 : i64, scratch_operands = 0 : i64, tpu.core_type = #tpu.core_type<tc>, window_params = [{transform_indices = @transform_0, window_bounds = array<i64: 2, 512>}, {pipeline_mode = #tpu.pipeline_mode<synchronous>, transform_indices = @transform_1, window_bounds = array<i64: 32, 5>}, {pipeline_mode = #tpu.pipeline_mode<synchronous>, transform_indices = @transform_2, window_bounds = array<i64: 32, 1>}, {pipeline_mode = #tpu.pipeline_mode<synchronous>, transform_indices = @transform_3, window_bounds = array<i64: 32, 32>}, {pipeline_mode = #tpu.pipeline_mode<synchronous>, transform_indices = @transform_4, window_bounds = array<i64: 32, 1>}, {pipeline_mode = #tpu.pipeline_mode<synchronous>, transform_indices = @transform_5, window_bounds = array<i64: 1, 32>}, {pipeline_mode = #tpu.pipeline_mode<synchronous>, transform_indices = @transform_6, window_bounds = array<i64: 1, 1>}, {transform_indices = @transform_7, window_bounds = array<i64: 1, 512>}]} {
    %c0 = arith.constant 0 : index
    %c0_0 = arith.constant 0 : index
    %0 = vector.load %arg1[%c0, %c0_0] : memref<2x512xf32, #tpu.memory_space<vmem>>, vector<1x512xf32>
    %c1 = arith.constant 1 : index
    %c0_1 = arith.constant 0 : index
    %1 = vector.load %arg1[%c1, %c0_1] : memref<2x512xf32, #tpu.memory_space<vmem>>, vector<1x512xf32>
    %2 = arith.subf %0, %1 : vector<1x512xf32>
    %cst = arith.constant 1.000000e-01 : f32
    %3 = vector.broadcast %cst : f32 to vector<1x512xf32>
    %4 = arith.addf %1, %3 : vector<1x512xf32>
    %5 = arith.divf %0, %4 : vector<1x512xf32>
    %cst_2 = arith.constant 1.000000e-01 : f32
    %6 = vector.broadcast %cst_2 : f32 to vector<1x512xf32>
    %7 = arith.addf %0, %6 : vector<1x512xf32>
    %8 = arith.divf %1, %7 : vector<1x512xf32>
    %c0_3 = arith.constant 0 : index
    %c0_4 = arith.constant 0 : index
    %9 = vector.load %arg2[%c0_3, %c0_4] : memref<32x5xf32, #tpu.memory_space<vmem>>, vector<32x5xf32>
    %10 = vector.extract_strided_slice %9 {offsets = [0, 0], sizes = [32, 1], strides = [1, 1]} : vector<32x5xf32> to vector<32x1xf32>
    %11 = vector.broadcast %10 : vector<32x1xf32> to vector<32x512xf32>
    %12 = vector.broadcast %0 : vector<1x512xf32> to vector<32x512xf32>
    %13 = arith.mulf %11, %12 : vector<32x512xf32>
    %14 = vector.extract_strided_slice %9 {offsets = [0, 1], sizes = [32, 1], strides = [1, 1]} : vector<32x5xf32> to vector<32x1xf32>
    %15 = vector.broadcast %14 : vector<32x1xf32> to vector<32x512xf32>
    %16 = vector.broadcast %1 : vector<1x512xf32> to vector<32x512xf32>
    %17 = arith.mulf %15, %16 : vector<32x512xf32>
    %18 = arith.addf %13, %17 : vector<32x512xf32>
    %19 = vector.extract_strided_slice %9 {offsets = [0, 2], sizes = [32, 1], strides = [1, 1]} : vector<32x5xf32> to vector<32x1xf32>
    %20 = vector.broadcast %19 : vector<32x1xf32> to vector<32x512xf32>
    %21 = vector.broadcast %2 : vector<1x512xf32> to vector<32x512xf32>
    %22 = arith.mulf %20, %21 : vector<32x512xf32>
    %23 = arith.addf %18, %22 : vector<32x512xf32>
    %24 = vector.extract_strided_slice %9 {offsets = [0, 3], sizes = [32, 1], strides = [1, 1]} : vector<32x5xf32> to vector<32x1xf32>
    %25 = vector.broadcast %24 : vector<32x1xf32> to vector<32x512xf32>
    %26 = vector.broadcast %5 : vector<1x512xf32> to vector<32x512xf32>
    %27 = arith.mulf %25, %26 : vector<32x512xf32>
    %28 = arith.addf %23, %27 : vector<32x512xf32>
    %29 = vector.extract_strided_slice %9 {offsets = [0, 4], sizes = [32, 1], strides = [1, 1]} : vector<32x5xf32> to vector<32x1xf32>
    %30 = vector.broadcast %29 : vector<32x1xf32> to vector<32x512xf32>
    %31 = vector.broadcast %8 : vector<1x512xf32> to vector<32x512xf32>
    %32 = arith.mulf %30, %31 : vector<32x512xf32>
    %33 = arith.addf %28, %32 : vector<32x512xf32>
    %c0_5 = arith.constant 0 : index
    %c0_6 = arith.constant 0 : index
    %34 = vector.load %arg3[%c0_5, %c0_6] : memref<32x1xf32, #tpu.memory_space<vmem>>, vector<32x1xf32>
    %35 = vector.broadcast %34 : vector<32x1xf32> to vector<32x512xf32>
    %36 = arith.addf %33, %35 : vector<32x512xf32>
    %cst_7 = arith.constant 2.000000e-01 : f32
    %37 = vector.broadcast %cst_7 : f32 to vector<32x512xf32>
    %38 = arith.mulf %37, %36 : vector<32x512xf32>
    %39 = arith.maximumf %36, %38 : vector<32x512xf32>
    %c0_8 = arith.constant 0 : index
    %c0_9 = arith.constant 0 : index
    %40 = vector.load %arg4[%c0_8, %c0_9] : memref<32x32xf32, #tpu.memory_space<vmem>>, vector<32x32xf32>
    %cst_10 = arith.constant dense<0.000000e+00> : vector<32x512xf32>
    %41 = tpu.matmul %40, %39, %cst_10 {dimension_numbers = #tpu.dot_dimension_numbers<[1], [0], [0], [1], [0, 0, 1, 1], [], []>} : vector<32x32xf32>, vector<32x512xf32>, vector<32x512xf32> -> vector<32x512xf32>
    %c0_11 = arith.constant 0 : index
    %c0_12 = arith.constant 0 : index
    %42 = vector.load %arg5[%c0_11, %c0_12] : memref<32x1xf32, #tpu.memory_space<vmem>>, vector<32x1xf32>
    %43 = vector.broadcast %42 : vector<32x1xf32> to vector<32x512xf32>
    %44 = arith.addf %41, %43 : vector<32x512xf32>
    %cst_13 = arith.constant 2.000000e-01 : f32
    %45 = vector.broadcast %cst_13 : f32 to vector<32x512xf32>
    %46 = arith.mulf %45, %44 : vector<32x512xf32>
    %47 = arith.maximumf %44, %46 : vector<32x512xf32>
    %c0_14 = arith.constant 0 : index
    %c0_15 = arith.constant 0 : index
    %48 = vector.load %arg6[%c0_14, %c0_15] : memref<1x32xf32, #tpu.memory_space<vmem>>, vector<1x32xf32>
    %cst_16 = arith.constant dense<0.000000e+00> : vector<1x512xf32>
    %49 = tpu.matmul %48, %47, %cst_16 {dimension_numbers = #tpu.dot_dimension_numbers<[1], [0], [0], [1], [0, 0, 1, 1], [], []>} : vector<1x32xf32>, vector<32x512xf32>, vector<1x512xf32> -> vector<1x512xf32>
    %c0_17 = arith.constant 0 : index
    %c0_18 = arith.constant 0 : index
    %50 = vector.load %arg7[%c0_17, %c0_18] : memref<1x1xf32, #tpu.memory_space<vmem>>, vector<1x1xf32>
    %51 = vector.broadcast %50 : vector<1x1xf32> to vector<1x512xf32>
    %52 = arith.addf %49, %51 : vector<1x512xf32>
    %cst_19 = arith.constant 0.000000e+00 : f32
    %53 = vector.broadcast %cst_19 : f32 to vector<1x512xf32>
    %54 = arith.subf %53, %52 : vector<1x512xf32>
    %55 = math.exp %54 : vector<1x512xf32>
    %cst_20 = arith.constant 1.000000e+00 : f32
    %56 = vector.broadcast %cst_20 : f32 to vector<1x512xf32>
    %57 = arith.addf %56, %55 : vector<1x512xf32>
    %cst_21 = arith.constant 1.000000e+00 : f32
    %58 = vector.broadcast %cst_21 : f32 to vector<1x512xf32>
    %59 = arith.divf %58, %57 : vector<1x512xf32>
    %c0_22 = arith.constant 0 : index
    %c0_23 = arith.constant 0 : index
    %60 = vector.load %arg8[%c0_22, %c0_23] : memref<1x512xf32, #tpu.memory_space<vmem>>, vector<1x512xf32>
    tpu.vector_store %arg8[%c0_22, %c0_23], %59 {strides = array<i32>} : memref<1x512xf32, #tpu.memory_space<vmem>>, vector<1x512xf32>,
    return
  }
  func.func @transform_0(%arg0: i32) -> (i32, i32) {
    %c0_i32 = arith.constant 0 : i32
    %c0_i32_0 = arith.constant 0 : i32
    return %c0_i32, %arg0 : i32, i32
  }
  func.func @transform_1(%arg0: i32) -> (i32, i32) {
    %c0_i32 = arith.constant 0 : i32
    %c0_i32_0 = arith.constant 0 : i32
    %c0_i32_1 = arith.constant 0 : i32
    return %c0_i32, %c0_i32_0 : i32, i32
  }
  func.func @transform_2(%arg0: i32) -> (i32, i32) {
    %c0_i32 = arith.constant 0 : i32
    %c0_i32_0 = arith.constant 0 : i32
    %c0_i32_1 = arith.constant 0 : i32
    return %c0_i32, %c0_i32_0 : i32, i32
  }
  func.func @transform_3(%arg0: i32) -> (i32, i32) {
    %c0_i32 = arith.constant 0 : i32
    %c0_i32_0 = arith.constant 0 : i32
    %c0_i32_1 = arith.constant 0 : i32
    return %c0_i32, %c0_i32_0 : i32, i32
  }
  func.func @transform_4(%arg0: i32) -> (i32, i32) {
    %c0_i32 = arith.constant 0 : i32
    %c0_i32_0 = arith.constant 0 : i32
    %c0_i32_1 = arith.constant 0 : i32
    return %c0_i32, %c0_i32_0 : i32, i32
  }
  func.func @transform_5(%arg0: i32) -> (i32, i32) {
    %c0_i32 = arith.constant 0 : i32
    %c0_i32_0 = arith.constant 0 : i32
    %c0_i32_1 = arith.constant 0 : i32
    return %c0_i32, %c0_i32_0 : i32, i32
  }
  func.func @transform_6(%arg0: i32) -> (i32, i32) {
    %c0_i32 = arith.constant 0 : i32
    %c0_i32_0 = arith.constant 0 : i32
    %c0_i32_1 = arith.constant 0 : i32
    return %c0_i32, %c0_i32_0 : i32, i32
  }
  func.func @transform_7(%arg0: i32) -> (i32, i32) {
    %c0_i32 = arith.constant 0 : i32
    %c0_i32_0 = arith.constant 0 : i32
    return %c0_i32, %arg0 : i32, i32
  }
}

</mosaic_0001>

<llo_original>
// kernel: tpu_custom_call.1
$region0: #{tpu_custom_call.1}
  #allocation0 [shape = 'u32[]', space=smem, size = 0x4, offset = 0x4, fixed_abs, tag = 'smem constant byte address 0x4 - core index']
  #allocation1 [shape = 'u32[144,128]{1,0:T(1,128)}', space=vmem, size = 0x12000, scoped, tag = 'internal scratch']
  #allocation2 [shape = 'f32[1,1]{1,0:T(1,128)S(1)}', space=vmem, size = 0x200, scoped, tag = 'scoped memory for tpu_custom_call.1']
  %s0 = inlined_call_operand.vmem [shape: f32[2,512], index: 0, kind: input, shape index: {}]
  %s1 = inlined_call_operand.vmem [shape: f32[32,5], index: 1, kind: input, shape index: {}]
  %s2 = inlined_call_operand.vmem [shape: f32[32,1], index: 2, kind: input, shape index: {}]
  %s3 = inlined_call_operand.vmem [shape: f32[32,32], index: 3, kind: input, shape index: {}]
  %s4 = inlined_call_operand.vmem [shape: f32[32,1], index: 4, kind: input, shape index: {}]
  %s5 = inlined_call_operand.vmem [shape: f32[1,32], index: 5, kind: input, shape index: {}]
  %s6 = inlined_call_operand.<no memory space> [shape: f32[1,1], index: 6, kind: input, shape index: {}]
  %s7 = inlined_call_operand.hbm [shape: f32[1,512], index: 7, kind: output, shape index: {}]
  %s8 = sld [smem:[#allocation0]]
  $region38: #{tpu_custom_call.1} parent=0
    _
  %s10 = ssub.s32 1, %s8
  %s11 = scalar_select 0, %s10, %s8
  %v12 = vstv %s6
  %13 = vst [vmem:[#allocation2] sm:$0x1] %v12
  $region1: #{tpu_custom_call.1} parent=0
    #allocation3 [shape = 'u8[2048]{0}', space=vmem, size = 0x800, scoped, tag = 'output window, operand 0, single buffered']
    #allocation4 [shape = 's32[1]{0}', space=sflag, size = 0x4, scoped, tag = 'scoped memory for tpu_custom_call.1']
    %14 = vsyncpa [#allocation4], 0
    // Predicated region
    $region2: #{tpu_custom_call.1} parent=1 // pred_check
      _
    $region3: #{tpu_custom_call.1} parent=1 // pred_check_branch
      %16 = sbr.rel (0) target = $region5
    $region4: #{tpu_custom_call.1} parent=1 // pred_region
      _
    $region5: #{tpu_custom_call.1} parent=1 // pred_fallthru
      _
    // Predicated region
    $region6: #{tpu_custom_call.1} parent=1 // pred_check
      _
    $region7: #{tpu_custom_call.1} parent=1 // pred_check_branch
      %18 = sbr.rel (0) target = $region9
    $region8: #{tpu_custom_call.1} parent=1 // pred_region
      _
    $region9: #{tpu_custom_call.1} parent=1 // pred_fallthru
      _
    // Predicated region
    $region10: #{tpu_custom_call.1} parent=1 // pred_check
      _
    $region11: #{tpu_custom_call.1} parent=1 // pred_check_branch
      %20 = sbr.rel (0) target = $region13
    $region12: #{tpu_custom_call.1} parent=1 // pred_region
      _
    $region13: #{tpu_custom_call.1} parent=1 // pred_fallthru
      _
    // Predicated region
    $region14: #{tpu_custom_call.1} parent=1 // pred_check
      _
    $region15: #{tpu_custom_call.1} parent=1 // pred_check_branch
      %22 = sbr.rel (0) target = $region17
    $region16: #{tpu_custom_call.1} parent=1 // pred_region
      _
    $region17: #{tpu_custom_call.1} parent=1 // pred_fallthru
      _
    // Predicated region
    $region18: #{tpu_custom_call.1} parent=1 // pred_check
      _
    $region19: #{tpu_custom_call.1} parent=1 // pred_check_branch
      %24 = sbr.rel (0) target = $region21
    $region20: #{tpu_custom_call.1} parent=1 // pred_region
      _
    $region21: #{tpu_custom_call.1} parent=1 // pred_fallthru
      _
    // Predicated region
    $region22: #{tpu_custom_call.1} parent=1 // pred_check
      _
    $region23: #{tpu_custom_call.1} parent=1 // pred_check_branch
      %26 = sbr.rel (0) target = $region25
    $region24: #{tpu_custom_call.1} parent=1 // pred_region
      _
    $region25: #{tpu_custom_call.1} parent=1 // pred_fallthru
      _
    // Predicated region
    $region26: #{tpu_custom_call.1} parent=1 // pred_check
      _
    $region27: #{tpu_custom_call.1} parent=1 // pred_check_branch
      %28 = sbr.rel (0) target = $region29
    $region28: #{tpu_custom_call.1} parent=1 // pred_region
      _
    $region29: #{tpu_custom_call.1} parent=1 // pred_fallthru
      _
    %v29 = vld [vmem:[%s0] ss:$2 sm:$0xf]
    %s30 = scalar_lea.vmem %s0, 1
    %v31 = vld [vmem:[%s30] ss:$2 sm:$0xf]
    %v32 = vsub.f32 %v29, %v31
    %v33 = vadd.f32 %v31, 0.1
    %v34 = vrcp.pop %v33
    %v35 = vmul.f32 %v29, %v34
    %v36 = vadd.f32 %v29, 0.1
    %v37 = vrcp.pop %v36
    %v38 = vmul.f32 %v31, %v37
    %v39 = vld [vmem:[%s1] sm:$0xff]
    %v40 = vld [vmem:[%s1 + $0x8] sm:$0xff]
    %v41 = vld [vmem:[%s1 + $0x10] sm:$0xff]
    %v42 = vld [vmem:[%s1 + $0x18] sm:$0xff]
    %44 = vset.pattern.permute.xlu0 0
    %45 = vperm.xlu0 %44, %v39
    %v46 = vpop.permute.xlu0 %45
    %49 = vset.pattern.permute.xlu0 0
    %50 = vperm.xlu0 %49, %v40
    %v51 = vpop.permute.xlu0 %50
    %54 = vset.pattern.permute.xlu0 0
    %55 = vperm.xlu0 %54, %v41
    %v56 = vpop.permute.xlu0 %55
    %59 = vset.pattern.permute.xlu0 0
    %60 = vperm.xlu0 %59, %v42
    %v61 = vpop.permute.xlu0 %60
    %v64 = vlaneseq
    %v65 = vshrl.u32 %v64, 7
    %v66 = vsub.s32 0, %v65
    %v67 = vrot.slane %v29, %v66
    %v68 = vlaneseq
    %v69 = vshrl.u32 %v68, 7
    %v70 = vsub.s32 1, %v69
    %v71 = vrot.slane %v29, %v70
    %v72 = vlaneseq
    %v73 = vshrl.u32 %v72, 7
    %v74 = vsub.s32 2, %v73
    %v75 = vrot.slane %v29, %v74
    %v76 = vlaneseq
    %v77 = vshrl.u32 %v76, 7
    %v78 = vsub.s32 3, %v77
    %v79 = vrot.slane %v29, %v78
    %v84 = vmul.f32 %v46, %v67
    %v85 = vmul.f32 %v46, %v71
    %v86 = vmul.f32 %v46, %v75
    %v87 = vmul.f32 %v46, %v79
    %v88 = vmul.f32 %v51, %v67
    %v89 = vmul.f32 %v51, %v71
    %v90 = vmul.f32 %v51, %v75
    %v91 = vmul.f32 %v51, %v79
    %v92 = vmul.f32 %v56, %v67
    %v93 = vmul.f32 %v56, %v71
    %v94 = vmul.f32 %v56, %v75
    %v95 = vmul.f32 %v56, %v79
    %v96 = vmul.f32 %v61, %v67
    %v97 = vmul.f32 %v61, %v71
    %v98 = vmul.f32 %v61, %v75
    %v99 = vmul.f32 %v61, %v79
    %100 = vset.pattern.permute.xlu0 1
    %101 = vperm.xlu0 %100, %v39
    %v102 = vpop.permute.xlu0 %101
    %104 = vset.pattern.permute.xlu0 1
    %105 = vperm.xlu0 %104, %v40
    %v106 = vpop.permute.xlu0 %105
    %108 = vset.pattern.permute.xlu0 1
    %109 = vperm.xlu0 %108, %v41
    %v110 = vpop.permute.xlu0 %109
    %112 = vset.pattern.permute.xlu0 1
    %113 = vperm.xlu0 %112, %v42
    %v114 = vpop.permute.xlu0 %113
    %v117 = vlaneseq
    %v118 = vshrl.u32 %v117, 7
    %v119 = vsub.s32 0, %v118
    %v120 = vrot.slane %v31, %v119
    %v121 = vlaneseq
    %v122 = vshrl.u32 %v121, 7
    %v123 = vsub.s32 1, %v122
    %v124 = vrot.slane %v31, %v123
    %v125 = vlaneseq
    %v126 = vshrl.u32 %v125, 7
    %v127 = vsub.s32 2, %v126
    %v128 = vrot.slane %v31, %v127
    %v129 = vlaneseq
    %v130 = vshrl.u32 %v129, 7
    %v131 = vsub.s32 3, %v130
    %v132 = vrot.slane %v31, %v131
    %v137 = vmul.f32 %v102, %v120
    %v138 = vmul.f32 %v102, %v124
    %v139 = vmul.f32 %v102, %v128
    %v140 = vmul.f32 %v102, %v132
    %v141 = vmul.f32 %v106, %v120
    %v142 = vmul.f32 %v106, %v124
    %v143 = vmul.f32 %v106, %v128
    %v144 = vmul.f32 %v106, %v132
    %v145 = vmul.f32 %v110, %v120
    %v146 = vmul.f32 %v110, %v124
    %v147 = vmul.f32 %v110, %v128
    %v148 = vmul.f32 %v110, %v132
    %v149 = vmul.f32 %v114, %v120
    %v150 = vmul.f32 %v114, %v124
    %v151 = vmul.f32 %v114, %v128
    %v152 = vmul.f32 %v114, %v132
    %v153 = vadd.f32 %v84, %v137
    %v154 = vadd.f32 %v85, %v138
    %v155 = vadd.f32 %v86, %v139
    %v156 = vadd.f32 %v87, %v140
    %v157 = vadd.f32 %v88, %v141
    %v158 = vadd.f32 %v89, %v142
    %v159 = vadd.f32 %v90, %v143
    %v160 = vadd.f32 %v91, %v144
    %v161 = vadd.f32 %v92, %v145
    %v162 = vadd.f32 %v93, %v146
    %v163 = vadd.f32 %v94, %v147
    %v164 = vadd.f32 %v95, %v148
    %v165 = vadd.f32 %v96, %v149
    %v166 = vadd.f32 %v97, %v150
    %v167 = vadd.f32 %v98, %v151
    %v168 = vadd.f32 %v99, %v152
    %169 = vset.pattern.permute.xlu0 2
    %170 = vperm.xlu0 %169, %v39
    %v171 = vpop.permute.xlu0 %170
    %173 = vset.pattern.permute.xlu0 2
    %174 = vperm.xlu0 %173, %v40
    %v175 = vpop.permute.xlu0 %174
    %177 = vset.pattern.permute.xlu0 2
    %178 = vperm.xlu0 %177, %v41
    %v179 = vpop.permute.xlu0 %178
    %181 = vset.pattern.permute.xlu0 2
    %182 = vperm.xlu0 %181, %v42
    %v183 = vpop.permute.xlu0 %182
    %v186 = vlaneseq
    %v187 = vshrl.u32 %v186, 7
    %v188 = vsub.s32 0, %v187
    %v189 = vrot.slane %v32, %v188
    %v190 = vlaneseq
    %v191 = vshrl.u32 %v190, 7
    %v192 = vsub.s32 1, %v191
    %v193 = vrot.slane %v32, %v192
    %v194 = vlaneseq
    %v195 = vshrl.u32 %v194, 7
    %v196 = vsub.s32 2, %v195
    %v197 = vrot.slane %v32, %v196
    %v198 = vlaneseq
    %v199 = vshrl.u32 %v198, 7
    %v200 = vsub.s32 3, %v199
    %v201 = vrot.slane %v32, %v200
    %v206 = vmul.f32 %v171, %v189
    %v207 = vmul.f32 %v171, %v193
    %v208 = vmul.f32 %v171, %v197
    %v209 = vmul.f32 %v171, %v201
    %v210 = vmul.f32 %v175, %v189
    %v211 = vmul.f32 %v175, %v193
    %v212 = vmul.f32 %v175, %v197
    %v213 = vmul.f32 %v175, %v201
    %v214 = vmul.f32 %v179, %v189
    %v215 = vmul.f32 %v179, %v193
    %v216 = vmul.f32 %v179, %v197
    %v217 = vmul.f32 %v179, %v201
    %v218 = vmul.f32 %v183, %v189
    %v219 = vmul.f32 %v183, %v193
    %v220 = vmul.f32 %v183, %v197
    %v221 = vmul.f32 %v183, %v201
    %v222 = vadd.f32 %v153, %v206
    %v223 = vadd.f32 %v154, %v207
    %v224 = vadd.f32 %v155, %v208
    %v225 = vadd.f32 %v156, %v209
    %v226 = vadd.f32 %v157, %v210
    %v227 = vadd.f32 %v158, %v211
    %v228 = vadd.f32 %v159, %v212
    %v229 = vadd.f32 %v160, %v213
    %v230 = vadd.f32 %v161, %v214
    %v231 = vadd.f32 %v162, %v215
    %v232 = vadd.f32 %v163, %v216
    %v233 = vadd.f32 %v164, %v217
    %v234 = vadd.f32 %v165, %v218
    %v235 = vadd.f32 %v166, %v219
    %v236 = vadd.f32 %v167, %v220
    %v237 = vadd.f32 %v168, %v221
    %238 = vset.pattern.permute.xlu0 3
    %239 = vperm.xlu0 %238, %v39
    %v240 = vpop.permute.xlu0 %239
    %242 = vset.pattern.permute.xlu0 3
    %243 = vperm.xlu0 %242, %v40
    %v244 = vpop.permute.xlu0 %243
    %246 = vset.pattern.permute.xlu0 3
    %247 = vperm.xlu0 %246, %v41
    %v248 = vpop.permute.xlu0 %247
    %250 = vset.pattern.permute.xlu0 3
    %251 = vperm.xlu0 %250, %v42
    %v252 = vpop.permute.xlu0 %251
    %v255 = vlaneseq
    %v256 = vshrl.u32 %v255, 7
    %v257 = vsub.s32 0, %v256
    %v258 = vrot.slane %v35, %v257
    %v259 = vlaneseq
    %v260 = vshrl.u32 %v259, 7
    %v261 = vsub.s32 1, %v260
    %v262 = vrot.slane %v35, %v261
    %v263 = vlaneseq
    %v264 = vshrl.u32 %v263, 7
    %v265 = vsub.s32 2, %v264
    %v266 = vrot.slane %v35, %v265
    %v267 = vlaneseq
    %v268 = vshrl.u32 %v267, 7
    %v269 = vsub.s32 3, %v268
    %v270 = vrot.slane %v35, %v269
    %v275 = vmul.f32 %v240, %v258
    %v276 = vmul.f32 %v240, %v262
    %v277 = vmul.f32 %v240, %v266
    %v278 = vmul.f32 %v240, %v270
    %v279 = vmul.f32 %v244, %v258
    %v280 = vmul.f32 %v244, %v262
    %v281 = vmul.f32 %v244, %v266
    %v282 = vmul.f32 %v244, %v270
    %v283 = vmul.f32 %v248, %v258
    %v284 = vmul.f32 %v248, %v262
    %v285 = vmul.f32 %v248, %v266
    %v286 = vmul.f32 %v248, %v270
    %v287 = vmul.f32 %v252, %v258
    %v288 = vmul.f32 %v252, %v262
    %v289 = vmul.f32 %v252, %v266
    %v290 = vmul.f32 %v252, %v270
    %v291 = vadd.f32 %v222, %v275
    %v292 = vadd.f32 %v223, %v276
    %v293 = vadd.f32 %v224, %v277
    %v294 = vadd.f32 %v225, %v278
    %v295 = vadd.f32 %v226, %v279
    %v296 = vadd.f32 %v227, %v280
    %v297 = vadd.f32 %v228, %v281
    %v298 = vadd.f32 %v229, %v282
    %v299 = vadd.f32 %v230, %v283
    %v300 = vadd.f32 %v231, %v284
    %v301 = vadd.f32 %v232, %v285
    %v302 = vadd.f32 %v233, %v286
    %v303 = vadd.f32 %v234, %v287
    %v304 = vadd.f32 %v235, %v288
    %v305 = vadd.f32 %v236, %v289
    %v306 = vadd.f32 %v237, %v290
    %307 = vset.pattern.permute.xlu0 4
    %308 = vperm.xlu0 %307, %v39
    %v309 = vpop.permute.xlu0 %308
    %311 = vset.pattern.permute.xlu0 4
    %312 = vperm.xlu0 %311, %v40
    %v313 = vpop.permute.xlu0 %312
    %315 = vset.pattern.permute.xlu0 4
    %316 = vperm.xlu0 %315, %v41
    %v317 = vpop.permute.xlu0 %316
    %319 = vset.pattern.permute.xlu0 4
    %320 = vperm.xlu0 %319, %v42
    %v321 = vpop.permute.xlu0 %320
    %v324 = vlaneseq
    %v325 = vshrl.u32 %v324, 7
    %v326 = vsub.s32 0, %v325
    %v327 = vrot.slane %v38, %v326
    %v328 = vlaneseq
    %v329 = vshrl.u32 %v328, 7
    %v330 = vsub.s32 1, %v329
    %v331 = vrot.slane %v38, %v330
    %v332 = vlaneseq
    %v333 = vshrl.u32 %v332, 7
    %v334 = vsub.s32 2, %v333
    %v335 = vrot.slane %v38, %v334
    %v336 = vlaneseq
    %v337 = vshrl.u32 %v336, 7
    %v338 = vsub.s32 3, %v337
    %v339 = vrot.slane %v38, %v338
    %v344 = vmul.f32 %v309, %v327
    %v345 = vmul.f32 %v309, %v331
    %v346 = vmul.f32 %v309, %v335
    %v347 = vmul.f32 %v309, %v339
    %v348 = vmul.f32 %v313, %v327
    %v349 = vmul.f32 %v313, %v331
    %v350 = vmul.f32 %v313, %v335
    %v351 = vmul.f32 %v313, %v339
    %v352 = vmul.f32 %v317, %v327
    %v353 = vmul.f32 %v317, %v331
    %v354 = vmul.f32 %v317, %v335
    %v355 = vmul.f32 %v317, %v339
    %v356 = vmul.f32 %v321, %v327
    %v357 = vmul.f32 %v321, %v331
    %v358 = vmul.f32 %v321, %v335
    %v359 = vmul.f32 %v321, %v339
    %v360 = vadd.f32 %v291, %v344
    %v361 = vadd.f32 %v292, %v345
    %v362 = vadd.f32 %v293, %v346
    %v363 = vadd.f32 %v294, %v347
    %v364 = vadd.f32 %v295, %v348
    %v365 = vadd.f32 %v296, %v349
    %v366 = vadd.f32 %v297, %v350
    %v367 = vadd.f32 %v298, %v351
    %v368 = vadd.f32 %v299, %v352
    %v369 = vadd.f32 %v300, %v353
    %v370 = vadd.f32 %v301, %v354
    %v371 = vadd.f32 %v302, %v355
    %v372 = vadd.f32 %v303, %v356
    %v373 = vadd.f32 %v304, %v357
    %v374 = vadd.f32 %v305, %v358
    %v375 = vadd.f32 %v306, %v359
    %v376 = vld [vmem:[%s2] sm:$0xff]
    %v377 = vld [vmem:[%s2 + $0x8] sm:$0xff]
    %v378 = vld [vmem:[%s2 + $0x10] sm:$0xff]
    %v379 = vld [vmem:[%s2 + $0x18] sm:$0xff]
    %381 = vset.pattern.permute.xlu0 0
    %382 = vperm.xlu0 %381, %v376
    %v383 = vpop.permute.xlu0 %382
    %386 = vset.pattern.permute.xlu0 0
    %387 = vperm.xlu0 %386, %v377
    %v388 = vpop.permute.xlu0 %387
    %391 = vset.pattern.permute.xlu0 0
    %392 = vperm.xlu0 %391, %v378
    %v393 = vpop.permute.xlu0 %392
    %396 = vset.pattern.permute.xlu0 0
    %397 = vperm.xlu0 %396, %v379
    %v398 = vpop.permute.xlu0 %397
    %v400 = vadd.f32 %v360, %v383
    %v401 = vadd.f32 %v361, %v383
    %v402 = vadd.f32 %v362, %v383
    %v403 = vadd.f32 %v363, %v383
    %v404 = vadd.f32 %v364, %v388
    %v405 = vadd.f32 %v365, %v388
    %v406 = vadd.f32 %v366, %v388
    %v407 = vadd.f32 %v367, %v388
    %v408 = vadd.f32 %v368, %v393
    %v409 = vadd.f32 %v369, %v393
    %v410 = vadd.f32 %v370, %v393
    %v411 = vadd.f32 %v371, %v393
    %v412 = vadd.f32 %v372, %v398
    %v413 = vadd.f32 %v373, %v398
    %v414 = vadd.f32 %v374, %v398
    %v415 = vadd.f32 %v375, %v398
    %v416 = vmul.f32 %v400, 0.2
    %v417 = vmul.f32 %v401, 0.2
    %v418 = vmul.f32 %v402, 0.2
    %v419 = vmul.f32 %v403, 0.2
    %v420 = vmul.f32 %v404, 0.2
    %v421 = vmul.f32 %v405, 0.2
    %v422 = vmul.f32 %v406, 0.2
    %v423 = vmul.f32 %v407, 0.2
    %v424 = vmul.f32 %v408, 0.2
    %v425 = vmul.f32 %v409, 0.2
    %v426 = vmul.f32 %v410, 0.2
    %v427 = vmul.f32 %v411, 0.2
    %v428 = vmul.f32 %v412, 0.2
    %v429 = vmul.f32 %v413, 0.2
    %v430 = vmul.f32 %v414, 0.2
    %v431 = vmul.f32 %v415, 0.2
    %v432 = vmax.f32 %v400, %v416
    %v433 = vmax.f32 %v401, %v417
    %v434 = vmax.f32 %v402, %v418
    %v435 = vmax.f32 %v403, %v419
    %v436 = vmax.f32 %v404, %v420
    %v437 = vmax.f32 %v405, %v421
    %v438 = vmax.f32 %v406, %v422
    %v439 = vmax.f32 %v407, %v423
    %v440 = vmax.f32 %v408, %v424
    %v441 = vmax.f32 %v409, %v425
    %v442 = vmax.f32 %v410, %v426
    %v443 = vmax.f32 %v411, %v427
    %v444 = vmax.f32 %v412, %v428
    %v445 = vmax.f32 %v413, %v429
    %v446 = vmax.f32 %v414, %v430
    %v447 = vmax.f32 %v415, %v431
    %v448 = vld [vmem:[%s3] sm:$0xff]
    %v449 = vld [vmem:[%s3 + $0x8] sm:$0xff]
    %v450 = vld [vmem:[%s3 + $0x10] sm:$0xff]
    %v451 = vld [vmem:[%s3 + $0x18] sm:$0xff]
    %v452 = vld [vmem:[%s4] sm:$0xff]
    %v453 = vld [vmem:[%s4 + $0x8] sm:$0xff]
    %v454 = vld [vmem:[%s4 + $0x10] sm:$0xff]
    %v455 = vld [vmem:[%s4 + $0x18] sm:$0xff]
    %457 = vset.pattern.permute.xlu0 0
    %458 = vperm.xlu0 %457, %v452
    %v459 = vpop.permute.xlu0 %458
    %462 = vset.pattern.permute.xlu0 0
    %463 = vperm.xlu0 %462, %v453
    %v464 = vpop.permute.xlu0 %463
    %467 = vset.pattern.permute.xlu0 0
    %468 = vperm.xlu0 %467, %v454
    %v469 = vpop.permute.xlu0 %468
    %472 = vset.pattern.permute.xlu0 0
    %473 = vperm.xlu0 %472, %v455
    %v474 = vpop.permute.xlu0 %473
    %vm476 = vcmask 261120
    %v478 = vsel %vm476, %v448, 0
    %v481 = vsel %vm476, %v449, 0
    %v484 = vsel %vm476, %v450, 0
    %v487 = vsel %vm476, %v451, 0
    %489 = vmatprep.subr.mxu0 %v433
    %490 = vmatpush1.msra.mxu0 %v432
    %491 = vmatprep.subr.mxu0 %v437
    %492 = vmatpush1.msra.mxu0 %v436
    %493 = vmatprep.subr.mxu0 %v441
    %494 = vmatpush1.msra.mxu0 %v440
    %495 = vmatprep.subr.mxu0 %v445
    %496 = vmatpush1.msra.mxu0 %v444
    %497 = vmatprep.subr.mxu0 0.0
    %498 = vmatpush1.msra.mxu0 0.0
    %499 = vmatprep.subr.mxu0 0.0
    %500 = vmatpush1.msra.mxu0 0.0
    %501 = vmatprep.subr.mxu0 0.0
    %502 = vmatpush1.msra.mxu0 0.0
    %503 = vmatprep.subr.mxu0 0.0
    %504 = vmatpush1.msra.mxu0 0.0
    %505 = vmatprep.subr.mxu0 0.0
    %506 = vmatpush1.msra.mxu0 0.0
    %507 = vmatprep.subr.mxu0 0.0
    %508 = vmatpush1.msra.mxu0 0.0
    %509 = vmatprep.subr.mxu0 0.0
    %510 = vmatpush1.msra.mxu0 0.0
    %511 = vmatprep.subr.mxu0 0.0
    %512 = vmatpush1.msra.mxu0 0.0
    %513 = vmatprep.subr.mxu0 0.0
    %514 = vmatpush1.msra.mxu0 0.0
    %515 = vmatprep.subr.mxu0 0.0
    %516 = vmatpush1.msra.mxu0 0.0
    %517 = vmatprep.subr.mxu0 0.0
    %518 = vmatpush1.msra.mxu0 0.0
    %519 = vmatprep.subr.mxu0 0.0
    %520 = vmatpush1.msra.mxu0 0.0
    %521 = vmatprep.subr.mxu0 0.0
    %522 = vmatpush1.msra.mxu0 0.0
    %523 = vmatprep.subr.mxu0 0.0
    %524 = vmatpush1.msra.mxu0 0.0
    %525 = vmatprep.subr.mxu0 0.0
    %526 = vmatpush1.msra.mxu0 0.0
    %527 = vmatprep.subr.mxu0 0.0
    %528 = vmatpush1.msra.mxu0 0.0
    %529 = vmatprep.subr.mxu0 0.0
    %530 = vmatpush1.msra.mxu0 0.0
    %531 = vmatprep.subr.mxu0 0.0
    %532 = vmatpush1.msra.mxu0 0.0
    %533 = vmatprep.subr.mxu0 0.0
    %534 = vmatpush1.msra.mxu0 0.0
    %535 = vmatprep.subr.mxu0 0.0
    %536 = vmatpush1.msra.mxu0 0.0
    %537 = vmatprep.subr.mxu0 0.0
    %538 = vmatpush1.msra.mxu0 0.0
    %539 = vmatprep.subr.mxu0 0.0
    %540 = vmatpush1.msra.mxu0 0.0
    %541 = vmatprep.subr.mxu0 0.0
    %542 = vmatpush1.msra.mxu0 0.0
    %543 = vmatprep.subr.mxu0 0.0
    %544 = vmatpush1.msra.mxu0 0.0
    %545 = vmatprep.subr.mxu0 0.0
    %546 = vmatpush1.msra.mxu0 0.0
    %547 = vmatprep.subr.mxu0 0.0
    %548 = vmatpush1.msra.mxu0 0.0
    %549 = vmatprep.subr.mxu0 0.0
    %550 = vmatpush1.msra.mxu0 0.0
    %551 = vmatprep.subr.mxu0 0.0
    %552 = vmatpush1.msra.mxu0 0.0
    %553 = vmatprep.mubr.f32.mxu0 0.0
    %554 = vmatmul.mubr.f32.gmra.mrb[0].mxu0 %v478
    %v555 = vpop.f32.mrb[0].mxu0
    %v556 = vadd.f32 %v459, %v555
    %v557 = vpop.f32.mrb[0].mxu0
    %v558 = vadd.f32 %v459, %v557
    %559 = vmatprep.mubr.f32.mxu0 0.0
    %560 = vmatmul.mubr.f32.gmra.mrb[0].mxu0 %v481
    %v561 = vpop.f32.mrb[0].mxu0
    %v562 = vadd.f32 %v464, %v561
    %v563 = vpop.f32.mrb[0].mxu0
    %v564 = vadd.f32 %v464, %v563
    %565 = vmatprep.mubr.f32.mxu0 0.0
    %566 = vmatmul.mubr.f32.gmra.mrb[0].mxu0 %v484
    %v567 = vpop.f32.mrb[0].mxu0
    %v568 = vadd.f32 %v469, %v567
    %v569 = vpop.f32.mrb[0].mxu0
    %v570 = vadd.f32 %v469, %v569
    %571 = vmatprep.mubr.f32.mxu0 0.0
    %572 = vmatmul.mubr.f32.gmra.mrb[0].mxu0 %v487
    %v573 = vpop.f32.mrb[0].mxu0
    %v574 = vadd.f32 %v474, %v573
    %v575 = vpop.f32.mrb[0].mxu0
    %v576 = vadd.f32 %v474, %v575
    %577 = vdwg.mxu0
    %578 = vmatprep.subr.mxu0 %v435
    %579 = vmatpush1.msra.mxu0 %v434
    %580 = vmatprep.subr.mxu0 %v439
    %581 = vmatpush1.msra.mxu0 %v438
    %582 = vmatprep.subr.mxu0 %v443
    %583 = vmatpush1.msra.mxu0 %v442
    %584 = vmatprep.subr.mxu0 %v447
    %585 = vmatpush1.msra.mxu0 %v446
    %586 = vmatprep.subr.mxu0 0.0
    %587 = vmatpush1.msra.mxu0 0.0
    %588 = vmatprep.subr.mxu0 0.0
    %589 = vmatpush1.msra.mxu0 0.0
    %590 = vmatprep.subr.mxu0 0.0
    %591 = vmatpush1.msra.mxu0 0.0
    %592 = vmatprep.subr.mxu0 0.0
    %593 = vmatpush1.msra.mxu0 0.0
    %594 = vmatprep.subr.mxu0 0.0
    %595 = vmatpush1.msra.mxu0 0.0
    %596 = vmatprep.subr.mxu0 0.0
    %597 = vmatpush1.msra.mxu0 0.0
    %598 = vmatprep.subr.mxu0 0.0
    %599 = vmatpush1.msra.mxu0 0.0
    %600 = vmatprep.subr.mxu0 0.0
    %601 = vmatpush1.msra.mxu0 0.0
    %602 = vmatprep.subr.mxu0 0.0
    %603 = vmatpush1.msra.mxu0 0.0
    %604 = vmatprep.subr.mxu0 0.0
    %605 = vmatpush1.msra.mxu0 0.0
    %606 = vmatprep.subr.mxu0 0.0
    %607 = vmatpush1.msra.mxu0 0.0
    %608 = vmatprep.subr.mxu0 0.0
    %609 = vmatpush1.msra.mxu0 0.0
    %610 = vmatprep.subr.mxu0 0.0
    %611 = vmatpush1.msra.mxu0 0.0
    %612 = vmatprep.subr.mxu0 0.0
    %613 = vmatpush1.msra.mxu0 0.0
    %614 = vmatprep.subr.mxu0 0.0
    %615 = vmatpush1.msra.mxu0 0.0
    %616 = vmatprep.subr.mxu0 0.0
    %617 = vmatpush1.msra.mxu0 0.0
    %618 = vmatprep.subr.mxu0 0.0
    %619 = vmatpush1.msra.mxu0 0.0
    %620 = vmatprep.subr.mxu0 0.0
    %621 = vmatpush1.msra.mxu0 0.0
    %622 = vmatprep.subr.mxu0 0.0
    %623 = vmatpush1.msra.mxu0 0.0
    %624 = vmatprep.subr.mxu0 0.0
    %625 = vmatpush1.msra.mxu0 0.0
    %626 = vmatprep.subr.mxu0 0.0
    %627 = vmatpush1.msra.mxu0 0.0
    %628 = vmatprep.subr.mxu0 0.0
    %629 = vmatpush1.msra.mxu0 0.0
    %630 = vmatprep.subr.mxu0 0.0
    %631 = vmatpush1.msra.mxu0 0.0
    %632 = vmatprep.subr.mxu0 0.0
    %633 = vmatpush1.msra.mxu0 0.0
    %634 = vmatprep.subr.mxu0 0.0
    %635 = vmatpush1.msra.mxu0 0.0
    %636 = vmatprep.subr.mxu0 0.0
    %637 = vmatpush1.msra.mxu0 0.0
    %638 = vmatprep.subr.mxu0 0.0
    %639 = vmatpush1.msra.mxu0 0.0
    %640 = vmatprep.subr.mxu0 0.0
    %641 = vmatpush1.msra.mxu0 0.0
    %642 = vmatprep.mubr.f32.mxu0 0.0
    %643 = vmatmul.mubr.f32.gmra.mrb[0].mxu0 %v478
    %v644 = vpop.f32.mrb[0].mxu0
    %v645 = vadd.f32 %v459, %v644
    %v646 = vpop.f32.mrb[0].mxu0
    %v647 = vadd.f32 %v459, %v646
    %648 = vmatprep.mubr.f32.mxu0 0.0
    %649 = vmatmul.mubr.f32.gmra.mrb[0].mxu0 %v481
    %v650 = vpop.f32.mrb[0].mxu0
    %v651 = vadd.f32 %v464, %v650
    %v652 = vpop.f32.mrb[0].mxu0
    %v653 = vadd.f32 %v464, %v652
    %654 = vmatprep.mubr.f32.mxu0 0.0
    %655 = vmatmul.mubr.f32.gmra.mrb[0].mxu0 %v484
    %v656 = vpop.f32.mrb[0].mxu0
    %v657 = vadd.f32 %v469, %v656
    %v658 = vpop.f32.mrb[0].mxu0
    %v659 = vadd.f32 %v469, %v658
    %660 = vmatprep.mubr.f32.mxu0 0.0
    %661 = vmatmul.mubr.f32.gmra.mrb[0].mxu0 %v487
    %v662 = vpop.f32.mrb[0].mxu0
    %v663 = vadd.f32 %v474, %v662
    %v664 = vpop.f32.mrb[0].mxu0
    %v665 = vadd.f32 %v474, %v664
    %666 = vdwg.mxu0
    %v667 = vmul.f32 %v556, 0.2
    %v668 = vmul.f32 %v558, 0.2
    %v669 = vmul.f32 %v645, 0.2
    %v670 = vmul.f32 %v647, 0.2
    %v671 = vmul.f32 %v562, 0.2
    %v672 = vmul.f32 %v564, 0.2
    %v673 = vmul.f32 %v651, 0.2
    %v674 = vmul.f32 %v653, 0.2
    %v675 = vmul.f32 %v568, 0.2
    %v676 = vmul.f32 %v570, 0.2
    %v677 = vmul.f32 %v657, 0.2
    %v678 = vmul.f32 %v659, 0.2
    %v679 = vmul.f32 %v574, 0.2
    %v680 = vmul.f32 %v576, 0.2
    %v681 = vmul.f32 %v663, 0.2
    %v682 = vmul.f32 %v665, 0.2
    %v683 = vmax.f32 %v556, %v667
    %v684 = vmax.f32 %v558, %v668
    %v685 = vmax.f32 %v645, %v669
    %v686 = vmax.f32 %v647, %v670
    %v687 = vmax.f32 %v562, %v671
    %v688 = vmax.f32 %v564, %v672
    %v689 = vmax.f32 %v651, %v673
    %v690 = vmax.f32 %v653, %v674
    %v691 = vmax.f32 %v568, %v675
    %v692 = vmax.f32 %v570, %v676
    %v693 = vmax.f32 %v657, %v677
    %v694 = vmax.f32 %v659, %v678
    %v695 = vmax.f32 %v574, %v679
    %v696 = vmax.f32 %v576, %v680
    %v697 = vmax.f32 %v663, %v681
    %v698 = vmax.f32 %v665, %v682
    %v699 = vld [vmem:[%s5] sm:$0x1]
    %v700 = vld [vmem:[#allocation2] sm:$0x1]
    %702 = vset.pattern.permute.xlu0 0
    %703 = vperm.xlu0 %702, %v700
    %v704 = vpop.permute.xlu0 %703
    %v706 = vlaneseq
    %v707 = vshrl.u32 %v706, 7
    %v708 = vsub.s32 0, %v707
    %v709 = vrot.slane %v704, %v708
    %v711 = vsel %vm476, %v699, 0
    %713 = vmatprep.subr.mxu0 %v684
    %714 = vmatpush1.msra.mxu0 %v683
    %715 = vmatprep.subr.mxu0 %v688
    %716 = vmatpush1.msra.mxu0 %v687
    %717 = vmatprep.subr.mxu0 %v692
    %718 = vmatpush1.msra.mxu0 %v691
    %719 = vmatprep.subr.mxu0 %v696
    %720 = vmatpush1.msra.mxu0 %v695
    %721 = vmatprep.subr.mxu0 0.0
    %722 = vmatpush1.msra.mxu0 0.0
    %723 = vmatprep.subr.mxu0 0.0
    %724 = vmatpush1.msra.mxu0 0.0
    %725 = vmatprep.subr.mxu0 0.0
    %726 = vmatpush1.msra.mxu0 0.0
    %727 = vmatprep.subr.mxu0 0.0
    %728 = vmatpush1.msra.mxu0 0.0
    %729 = vmatprep.subr.mxu0 0.0
    %730 = vmatpush1.msra.mxu0 0.0
    %731 = vmatprep.subr.mxu0 0.0
    %732 = vmatpush1.msra.mxu0 0.0
    %733 = vmatprep.subr.mxu0 0.0
    %734 = vmatpush1.msra.mxu0 0.0
    %735 = vmatprep.subr.mxu0 0.0
    %736 = vmatpush1.msra.mxu0 0.0
    %737 = vmatprep.subr.mxu0 0.0
    %738 = vmatpush1.msra.mxu0 0.0
    %739 = vmatprep.subr.mxu0 0.0
    %740 = vmatpush1.msra.mxu0 0.0
    %741 = vmatprep.subr.mxu0 0.0
    %742 = vmatpush1.msra.mxu0 0.0
    %743 = vmatprep.subr.mxu0 0.0
    %744 = vmatpush1.msra.mxu0 0.0
    %745 = vmatprep.subr.mxu0 0.0
    %746 = vmatpush1.msra.mxu0 0.0
    %747 = vmatprep.subr.mxu0 0.0
    %748 = vmatpush1.msra.mxu0 0.0
    %749 = vmatprep.subr.mxu0 0.0
    %750 = vmatpush1.msra.mxu0 0.0
    %751 = vmatprep.subr.mxu0 0.0
    %752 = vmatpush1.msra.mxu0 0.0
    %753 = vmatprep.subr.mxu0 0.0
    %754 = vmatpush1.msra.mxu0 0.0
    %755 = vmatprep.subr.mxu0 0.0
    %756 = vmatpush1.msra.mxu0 0.0
    %757 = vmatprep.subr.mxu0 0.0
    %758 = vmatpush1.msra.mxu0 0.0
    %759 = vmatprep.subr.mxu0 0.0
    %760 = vmatpush1.msra.mxu0 0.0
    %761 = vmatprep.subr.mxu0 0.0
    %762 = vmatpush1.msra.mxu0 0.0
    %763 = vmatprep.subr.mxu0 0.0
    %764 = vmatpush1.msra.mxu0 0.0
    %765 = vmatprep.subr.mxu0 0.0
    %766 = vmatpush1.msra.mxu0 0.0
    %767 = vmatprep.subr.mxu0 0.0
    %768 = vmatpush1.msra.mxu0 0.0
    %769 = vmatprep.subr.mxu0 0.0
    %770 = vmatpush1.msra.mxu0 0.0
    %771 = vmatprep.subr.mxu0 0.0
    %772 = vmatpush1.msra.mxu0 0.0
    %773 = vmatprep.subr.mxu0 0.0
    %774 = vmatpush1.msra.mxu0 0.0
    %775 = vmatprep.subr.mxu0 0.0
    %776 = vmatpush1.msra.mxu0 0.0
    %777 = vmatprep.mubr.f32.mxu0 0.0
    %778 = vmatmul.mubr.f32.gmra.mrb[0].mxu0 %v711
    %v779 = vpop.f32.mrb[0].mxu0
    %v780 = vadd.f32 %v709, %v779
    %v781 = vpop.f32.mrb[0].mxu0
    %v782 = vadd.f32 %v709, %v781
    %783 = vdwg.mxu0
    %784 = vmatprep.subr.mxu0 %v686
    %785 = vmatpush1.msra.mxu0 %v685
    %786 = vmatprep.subr.mxu0 %v690
    %787 = vmatpush1.msra.mxu0 %v689
    %788 = vmatprep.subr.mxu0 %v694
    %789 = vmatpush1.msra.mxu0 %v693
    %790 = vmatprep.subr.mxu0 %v698
    %791 = vmatpush1.msra.mxu0 %v697
    %792 = vmatprep.subr.mxu0 0.0
    %793 = vmatpush1.msra.mxu0 0.0
    %794 = vmatprep.subr.mxu0 0.0
    %795 = vmatpush1.msra.mxu0 0.0
    %796 = vmatprep.subr.mxu0 0.0
    %797 = vmatpush1.msra.mxu0 0.0
    %798 = vmatprep.subr.mxu0 0.0
    %799 = vmatpush1.msra.mxu0 0.0
    %800 = vmatprep.subr.mxu0 0.0
    %801 = vmatpush1.msra.mxu0 0.0
    %802 = vmatprep.subr.mxu0 0.0
    %803 = vmatpush1.msra.mxu0 0.0
    %804 = vmatprep.subr.mxu0 0.0
    %805 = vmatpush1.msra.mxu0 0.0
    %806 = vmatprep.subr.mxu0 0.0
    %807 = vmatpush1.msra.mxu0 0.0
    %808 = vmatprep.subr.mxu0 0.0
    %809 = vmatpush1.msra.mxu0 0.0
    %810 = vmatprep.subr.mxu0 0.0
    %811 = vmatpush1.msra.mxu0 0.0
    %812 = vmatprep.subr.mxu0 0.0
    %813 = vmatpush1.msra.mxu0 0.0
    %814 = vmatprep.subr.mxu0 0.0
    %815 = vmatpush1.msra.mxu0 0.0
    %816 = vmatprep.subr.mxu0 0.0
    %817 = vmatpush1.msra.mxu0 0.0
    %818 = vmatprep.subr.mxu0 0.0
    %819 = vmatpush1.msra.mxu0 0.0
    %820 = vmatprep.subr.mxu0 0.0
    %821 = vmatpush1.msra.mxu0 0.0
    %822 = vmatprep.subr.mxu0 0.0
    %823 = vmatpush1.msra.mxu0 0.0
    %824 = vmatprep.subr.mxu0 0.0
    %825 = vmatpush1.msra.mxu0 0.0
    %826 = vmatprep.subr.mxu0 0.0
    %827 = vmatpush1.msra.mxu0 0.0
    %828 = vmatprep.subr.mxu0 0.0
    %829 = vmatpush1.msra.mxu0 0.0
    %830 = vmatprep.subr.mxu0 0.0
    %831 = vmatpush1.msra.mxu0 0.0
    %832 = vmatprep.subr.mxu0 0.0
    %833 = vmatpush1.msra.mxu0 0.0
    %834 = vmatprep.subr.mxu0 0.0
    %835 = vmatpush1.msra.mxu0 0.0
    %836 = vmatprep.subr.mxu0 0.0
    %837 = vmatpush1.msra.mxu0 0.0
    %838 = vmatprep.subr.mxu0 0.0
    %839 = vmatpush1.msra.mxu0 0.0
    %840 = vmatprep.subr.mxu0 0.0
    %841 = vmatpush1.msra.mxu0 0.0
    %842 = vmatprep.subr.mxu0 0.0
    %843 = vmatpush1.msra.mxu0 0.0
    %844 = vmatprep.subr.mxu0 0.0
    %845 = vmatpush1.msra.mxu0 0.0
    %846 = vmatprep.subr.mxu0 0.0
    %847 = vmatpush1.msra.mxu0 0.0
    %848 = vmatprep.mubr.f32.mxu0 0.0
    %849 = vmatmul.mubr.f32.gmra.mrb[0].mxu0 %v711
    %v850 = vpop.f32.mrb[0].mxu0
    %v851 = vadd.f32 %v709, %v850
    %v852 = vpop.f32.mrb[0].mxu0
    %v853 = vadd.f32 %v709, %v852
    %854 = vdwg.mxu0
    %v855 = vsub.f32 0.0, %v780
    %v856 = vsub.f32 0.0, %v782
    %v857 = vsub.f32 0.0, %v851
    %v858 = vsub.f32 0.0, %v853
    %v859 = vmul.f32 %v855, 1.442695
    %v860 = vpow.pop %v859
    %v861 = vmul.f32 %v856, 1.442695
    %v862 = vpow.pop %v861
    %v863 = vmul.f32 %v857, 1.442695
    %v864 = vpow.pop %v863
    %v865 = vmul.f32 %v858, 1.442695
    %v866 = vpow.pop %v865
    %v867 = vadd.f32 %v860, 1.0
    %v868 = vadd.f32 %v862, 1.0
    %v869 = vadd.f32 %v864, 1.0
    %v870 = vadd.f32 %v866, 1.0
    %v871 = vrcp.pop %v867
    %v872 = vmul.f32 1.0, %v871
    %v873 = vrcp.pop %v868
    %v874 = vmul.f32 1.0, %v873
    %v875 = vrcp.pop %v869
    %v876 = vmul.f32 1.0, %v875
    %v877 = vrcp.pop %v870
    %v878 = vmul.f32 1.0, %v877
    %v883 = vcombine.low %v872, %v874
    %v884 = vcombine.low %v876, %v878
    %v886 = vunpack.c.l.s4 1966171168
    %v887 = vunpack.c.0.s8 %v886
    %v888 = vlaneseq
    %v889 = vshrl.u32 %v888, 7
    %v890 = vsub.s32 %v887, %v889
    %v891 = vrot.slane %v883, %v890
    %v893 = vunpack.c.l.s4 1966171168
    %v894 = vunpack.c.0.s8 %v893
    %v895 = vlaneseq
    %v896 = vshrl.u32 %v895, 7
    %v897 = vsub.s32 %v894, %v896
    %v898 = vrot.slane %v884, %v897
    %v899 = vcombine.low %v891, %v898
    %v901 = vunpack.c.l.s4 1966171168
    %v902 = vunpack.c.0.s8 %v901
    %v903 = vlaneseq
    %v904 = vshrl.u32 %v903, 7
    %v905 = vsub.s32 %v902, %v904
    %v906 = vrot.slane %v899, %v905
    %v908 = vlaneseq
    %vm909 = vcmp.ge.s32.totalorder %v908, 0
    %vm910 = vcmp.lt.s32.totalorder %v908, 512
    %vm911 = vmand %vm909, %vm910
    %912 = vst.msk [vmem:[#allocation3] sm:$0xf] %vm911, %v906
    // Predicated region
    $region30: #{tpu_custom_call.1} parent=1 // pred_check
      _
    $region31: #{tpu_custom_call.1} parent=1 // pred_check_branch
      %914 = sbr.rel (0) target = $region33
    $region32: #{tpu_custom_call.1} parent=1 // pred_region
      %s916 = ssub.s32 64, 64
      %917 = vsyncadd [#allocation4], %s916
      %s919 = sshll.u32 [#allocation3], 4
      %s920 = int_to_ptr.vmem [resolvable:$true] %s919
      %922 = dma.vmem_to_hbm [thread:$0]  %s920, 64, %s7, [#allocation4]
    $region33: #{tpu_custom_call.1} parent=1 // pred_fallthru
      _
    // Predicated region
    $region34: #{tpu_custom_call.1} parent=1 // pred_check
      _
    $region35: #{tpu_custom_call.1} parent=1 // pred_check_branch
      %924 = sbr.rel (0) target = $region37
    $region36: #{tpu_custom_call.1} parent=1 // pred_region
      %925 = dma.done [#allocation4], 64
    $region37: #{tpu_custom_call.1} parent=1 // pred_fallthru
      _
    %926 = vsyncpa [#allocation4], 1

</llo_original>
